<compile_context>
chip_gen: v5e
topology: v5e:2x2
jax: 0.10.0
libtpu: 0.0.40
codegen_flags: <defaults>
</compile_context>

<pallas_src>
import math
import functools

import jax
import jax.numpy as jnp
from jax.experimental import pallas as pl
from jax.experimental.pallas import tpu as pltpu

# ----------------- synthetic mano / cfg stand-ins (small shapes) -----------------
VERTEX_NUM = 256            # mano.vertex_num   (real MANO: 778; kept tile friendly)
SH_JOINT_NUM = 16           # mano.sh_joint_num (real: 21)
ORIG_JOINT_NUM = 16         # mano.orig_joint_num
SHAPE_DIM = 10
SH_ROOT_JOINT_IDX = 0
FOCAL = (1000.0, 1000.0)
PRINCPT = (64.0, 64.0)
CAMERA_3D_SIZE = 2.5
INPUT_HAND_SHAPE = (256, 256)
OUTPUT_HAND_HM_SHAPE = (8, 8, 8)

K_VALUE = math.sqrt(FOCAL[0] * FOCAL[1] * CAMERA_3D_SIZE * CAMERA_3D_SIZE
                    / (INPUT_HAND_SHAPE[0] * INPUT_HAND_SHAPE[1]))

K_BETAS = 2 * SHAPE_DIM + 2 + 6             # 28 packed "betas" columns per hand
LSEL_ROW = 2 * SHAPE_DIM                    # row index of the lsel indicator column
RSEL_ROW = 2 * SHAPE_DIM + 1                # row index of the rsel indicator column
JOINT_LANES = 128                           # learned joints padded 3*J=48 -> 128 lanes
OUT_LANES = 3 * VERTEX_NUM + JOINT_LANES    # 768 mesh lanes + 128 joint lanes = 896
TILE_N = 256                                # hands per grid step (rows, f32)


def _round_up(x, m):
    return ((x + m - 1) // m) * m


# ================================ fused Pallas kernel =============================
def _fused_hands_kernel(betas_ref, w_ref, out_ref):
    """All per-hand per-vertex math is pre-folded into w_ref (pack_params); the kernel
    is one lane-dense MXU matmul: [mesh_cam | learned joints] = betas_full @ w_full."""
    out_ref[...] = jnp.dot(betas_ref[...], w_ref[...],
                           preferred_element_type=jnp.float32)


def fused_hands(betas_full, w_full):
    """betas_full: (N, 28) per-hand packed coefficients; w_full: (28, 3V+128)."""
    n, k = betas_full.shape
    out_lanes = w_full.shape[1]

    tn = min(TILE_N, _round_up(n, 8))            # rows per grid step (multiple of 8)
    n_pad = _round_up(n, tn)                     # pad hands to full tiles / sublanes
    if n_pad != n:
        betas_full = jnp.pad(betas_full, ((0, n_pad - n), (0, 0)))

    grid = (pl.cdiv(n_pad, tn),)
    out = pl.pallas_call(
        _fused_hands_kernel,
        out_shape=jax.ShapeDtypeStruct((n_pad, out_lanes), jnp.float32),
        grid=grid,
        in_specs=[pl.BlockSpec((tn, k), lambda i: (i, 0)),          # per-hand rows
                  pl.BlockSpec((k, out_lanes), lambda i: (0, 0))],  # resident weight
        out_specs=pl.BlockSpec((tn, out_lanes), lambda i: (i, 0)),
        compiler_params=pltpu.CompilerParams(
            dimension_semantics=("parallel",)),                     # megacore on v7x
    )(betas_full, w_full)
    return out[:n]


# ================================ parameter prep ==================================
def pack_params(raw):
    """One-time host-side fold of blendshape, camera translation, root-centering,
    left-hand mirroring and the learned joint regressor into a single weight."""
    V, J = VERTEX_NUM, SH_JOINT_NUM

    def cv(a):                     # (K, V, 3) -> (K, 3*V) coordinate-major (x|y|z)
        return jnp.transpose(a, (0, 2, 1)).reshape(a.shape[0], 3 * V)

    eye3 = jnp.eye(3, dtype=jnp.float32)
    # expand a per-hand (x, y, z) triple to the 3V coordinate-major slab
    expand3 = jnp.kron(eye3, jnp.ones((1, V), jnp.float32))                    # (3, 3V)
    # root-joint row of sh_joint_regressor, block-diagonal over x/y/z
    jrroot = jnp.kron(
        eye3, raw['sh_joint_regressor'][SH_ROOT_JOINT_IDX][:, None])           # (3V, 3)

    # rows match the betas_full column order built in model_forward:
    #   [betas*lsel | betas*rsel | lsel | rsel | cam*lsel | cam*rsel]   -> K=28
    sd_full = jnp.concatenate([
        cv(raw['shapedirs_left']),            # 0..9
        cv(raw['shapedirs_right']),           # 10..19
        cv(raw['template_left'][None]),       # 20 (lsel)
        cv(raw['template_right'][None]),      # 21 (rsel)
        expand3,                              # 22..24 (left cam translation)
        expand3,                              # 25..27 (right cam translation)
    ], axis=0)                                                                 # (28, 3V)

    # fold root-joint regression + root-centering:  mesh_cam = betas_full @ sd_centered
    sd_centered = sd_full - jnp.dot(sd_full, jrroot) @ expand3                 # (28, 3V)

    # learned nn.Linear joint regressor, input re-indexed (v*3+c -> c*V+v), transposed
    jr_w2 = jnp.transpose(raw['jr_w'].reshape(J * 3, V, 3),
                          (2, 1, 0)).reshape(3 * V, J * 3)                     # (3V, 3J)
    jr_b = raw['jr_b'].astype(jnp.float32)                                     # (3J,)

    # left-hand mirroring folded into the per-side rows (left/right columns of
    # betas_full are disjoint): regressor input gets x lanes negated, regressor
    # output gets x components negated, bias goes through the lsel/rsel indicators.
    xlane_in = jnp.concatenate([-jnp.ones((V,), jnp.float32),
                                jnp.ones((2 * V,), jnp.float32)])              # (3V,)
    xflip_out = jnp.tile(jnp.array([-1.0, 1.0, 1.0], jnp.float32), J)          # (3J,)
    left_cols = jnp.concatenate([jnp.ones((SHAPE_DIM,), jnp.float32),
                                 jnp.zeros((SHAPE_DIM,), jnp.float32),
                                 jnp.array([1.0, 0.0], jnp.float32),
                                 jnp.ones((3,), jnp.float32),
                                 jnp.zeros((3,), jnp.float32)])[:, None]       # (28, 1)

    sd_jr_in = jnp.where(left_cols > 0, sd_centered * xlane_in[None, :], sd_centered)
    w_joint = jnp.dot(sd_jr_in, jr_w2)                                         # (28, 3J)
    w_joint = jnp.where(left_cols > 0, w_joint * xflip_out[None, :], w_joint)
    w_joint = w_joint.at[LSEL_ROW].add(xflip_out * jr_b)
    w_joint = w_joint.at[RSEL_ROW].add(jr_b)

    # pad joints to 128 lanes and concat onto the mesh slab -> one lane-dense output
    w_joint_p = jnp.pad(w_joint, ((0, 0), (0, JOINT_LANES - 3 * J)))
    w_full = jnp.concatenate([sd_centered, w_joint_p], axis=1)                 # (28, 896)
    # TODO(synk): optional bf16 cast of w_full for v6e/v7x MXU (kept f32 for parity).
    return {'w_full': w_full}


# ================================ JAX glue ========================================
def rot6d_to_axis_angle(x6):
    a1, a2 = x6[:, 0:3], x6[:, 3:6]
    b1 = a1 / (jnp.linalg.norm(a1, axis=1, keepdims=True) + 1e-8)
    b2 = a2 - jnp.sum(b1 * a2, axis=1, keepdims=True) * b1
    b2 = b2 / (jnp.linalg.norm(b2, axis=1, keepdims=True) + 1e-8)
    b3 = jnp.cross(b1, b2)
    R = jnp.stack([b1, b2, b3], axis=2)
    trace = R[:, 0, 0] + R[:, 1, 1] + R[:, 2, 2]
    cos = jnp.clip((trace - 1.0) / 2.0, -1.0 + 1e-6, 1.0 - 1e-6)
    angle = jnp.arccos(cos)
    axis = jnp.stack([R[:, 2, 1] - R[:, 1, 2],
                      R[:, 0, 2] - R[:, 2, 0],
                      R[:, 1, 0] - R[:, 0, 1]], axis=1)
    axis = axis / (2.0 * jnp.sin(angle)[:, None] + 1e-8)
    return axis * angle[:, None]


@jax.jit
def model_forward(img, params, sim):
    """Test-mode forward of Model.  External constructor sub-modules (body_backbone,
    body_box_net, hand_roi_net, hand_position_net, hand_rotation_net, hand_trans_net)
    have unspecified architectures -> their outputs are deterministic stand-ins in `sim`."""
    # TODO(synk): F.interpolate(img) + backbone/box/roi/position/rotation/trans nets
    # are external modules; stubbed via `sim`.
    lhand_bbox, rhand_bbox = sim['lhand_bbox'], sim['rhand_bbox']
    rel_trans = sim['rel_trans']
    lhand_num = lhand_bbox.shape[0]

    # forward_rotation_net (rot6d -> axis-angle); left mirroring via sign masks.
    mano_root_pose = rot6d_to_axis_angle(sim['root_pose_6d']).reshape(-1, 3)
    mano_hand_pose = rot6d_to_axis_angle(
        sim['pose_param_6d'].reshape(-1, 6)).reshape(-1, (ORIG_JOINT_NUM - 1) * 3)
    mano_shape = sim['shape_param']
    n = mano_shape.shape[0]

    flip_yz = jnp.array([1.0, -1.0, -1.0], jnp.float32)
    lroot_pose = mano_root_pose[:lhand_num] * flip_yz
    rroot_pose = mano_root_pose[lhand_num:]
    lhand_pose = (mano_hand_pose[:lhand_num].reshape(lhand_num, ORIG_JOINT_NUM - 1, 3)
                  * flip_yz).reshape(lhand_num, -1)
    rhand_pose = mano_hand_pose[lhand_num:]
    lshape, rshape = mano_shape[:lhand_num], mano_shape[lhand_num:]

    # camera translation (get_camera_trans) + left-x mirror, done in the wrapper:
    # a (N,3) result is a masked-store shape in-kernel and XLA fuses this trivially.
    cam_trans = jnp.concatenate(
        [sim['cam_param'][:, :2],
         K_VALUE * jax.nn.sigmoid(sim['cam_param'][:, 2:3])], axis=1)          # (N, 3)
    lsel = (jnp.arange(n) < lhand_num).astype(jnp.float32)[:, None]
    rsel = 1.0 - lsel
    xsign = jnp.concatenate([1.0 - 2.0 * lsel, jnp.ones((n, 2), jnp.float32)], axis=1)
    cam_m = cam_trans * xsign                     # left hands: x negated (lcam_trans)
    lcam_trans, rcam_trans = cam_m[:lhand_num], cam_m[lhand_num:]

    # Packed per-hand coefficients; column order must match pack_params sd_full rows.
    betas_full = jnp.concatenate(
        [mano_shape * lsel, mano_shape * rsel, lsel, rsel,
         cam_m * lsel, cam_m * rsel], axis=1)                                  # (N, 28)

    # Single fused Pallas launch for all 2B hands -> [mesh_cam | learned joints].
    # TODO(synk): full MANO layer (pose blendshapes + LBS) not reproduced; linear
    # shape blend + translation stand-in, identical to the previous version.
    fused = fused_hands(betas_full, params['w_full'])                          # (N, 896)

    mesh_cam = fused[:, :3 * VERTEX_NUM].reshape(n, 3, VERTEX_NUM).transpose(0, 2, 1)
    lmesh_cam, rmesh_cam = mesh_cam[:lhand_num], mesh_cam[lhand_num:]

    joint_cam_learn = fused[:, 3 * VERTEX_NUM:
                            3 * VERTEX_NUM + 3 * SH_JOINT_NUM].reshape(n, SH_JOINT_NUM, 3)
    ljoint_cam_learn = joint_cam_learn[:lhand_num]
    rjoint_cam_learn = joint_cam_learn[lhand_num:]

    # TODO(synk): joint_img mirroring, sh-joint projection (joint_proj) and the
    # train-mode CoordLoss/ParamLoss paths only feed the stubbed hand_trans_net /
    # loss heads; test-mode forward only.
    out = {
        'img': img,
        'rel_trans': rel_trans,
        'lhand_bbox': lhand_bbox,
        'rhand_bbox': rhand_bbox,
        'lmano_mesh_cam': lmesh_cam,
        'rmano_mesh_cam': rmesh_cam,
        'lmano_joint_cam': ljoint_cam_learn,
        'rmano_joint_cam': rjoint_cam_learn,
        'lmano_root_pose': lroot_pose,
        'rmano_root_pose': rroot_pose,
        'lmano_hand_pose': lhand_pose,
        'rmano_hand_pose': rhand_pose,
        'lmano_shape': lshape,
        'rmano_shape': rshape,
        'lcam_trans': lcam_trans,
        'rcam_trans': rcam_trans,
    }
    return out


# ================================== main ==========================================
if __name__ == "__main__":
    key = jax.random.PRNGKey(0)
    keys = jax.random.split(key, 16)
    B = 2                     # images per batch -> lhand_num = rhand_num = B
    TOT = 2 * B               # total hands
    V, J = VERTEX_NUM, SH_JOINT_NUM

    raw_params = {
        'sh_joint_regressor': jax.random.uniform(keys[0], (J, V), jnp.float32) / V,
        'jr_w': jax.random.normal(keys[1], (J * 3, V * 3), jnp.float32) * 0.01,
        'jr_b': jnp.zeros((J * 3,), jnp.float32),
        'shapedirs_left': jax.random.normal(keys[2], (SHAPE_DIM, V, 3), jnp.float32) * 0.01,
        'shapedirs_right': jax.random.normal(keys[3], (SHAPE_DIM, V, 3), jnp.float32) * 0.01,
        'template_left': jax.random.normal(keys[4], (V, 3), jnp.float32) * 0.1,
        'template_right': jax.random.normal(keys[5], (V, 3), jnp.float32) * 0.1,
    }
    params = pack_params(raw_params)      # one-time weight fold / re-layout

    sim = {
        'lhand_bbox': jax.random.uniform(keys[6], (B, 4), jnp.float32),
        'rhand_bbox': jax.random.uniform(keys[7], (B, 4), jnp.float32),
        'joint_img': jax.random.uniform(keys[8], (TOT, J, 3), jnp.float32) * 8.0,
        'root_pose_6d': jax.random.normal(keys[9], (TOT, 6), jnp.float32),
        'pose_param_6d': jax.random.normal(keys[10], (TOT, (ORIG_JOINT_NUM - 1) * 6), jnp.float32),
        'shape_param': jax.random.normal(keys[11], (TOT, SHAPE_DIM), jnp.float32),
        'cam_param': jax.random.normal(keys[12], (TOT, 3), jnp.float32),
        'rel_trans': jax.random.normal(keys[13], (B, 3), jnp.float32),
    }
    img = jax.random.uniform(keys[14], (B, 3, 32, 32), jnp.float32)   # NCHW (torch layout)

    out = model_forward(img, params, sim)
    out = jax.block_until_ready(out)

    assert out['lmano_mesh_cam'].shape == (B, VERTEX_NUM, 3)
    assert out['rmano_mesh_cam'].shape == (B, VERTEX_NUM, 3)
    assert out['lmano_joint_cam'].shape == (B, SH_JOINT_NUM, 3)
    assert out['rmano_joint_cam'].shape == (B, SH_JOINT_NUM, 3)
    assert out['lcam_trans'].shape == (B, 3)
    assert out['rcam_trans'].shape == (B, 3)
    print("KERNEL_OK")
</pallas_src>

<mosaic_0001>
module attributes {stable_mosaic.version = 11 : i64} {
  func.func @_fused_hands_kernel(%arg0: i32, %arg1: memref<8x28xf32, #tpu.memory_space<vmem>>, %arg2: memref<28x896xf32, #tpu.memory_space<vmem>>, %arg3: memref<8x896xf32, #tpu.memory_space<vmem>>) attributes {dimension_semantics = [#tpu.dimension_semantics<parallel>], iteration_bounds = array<i64: 1>, scalar_prefetch = 0 : i64, scratch_operands = 0 : i64, tpu.core_type = #tpu.core_type<tc>, window_params = [{transform_indices = @transform_0, window_bounds = array<i64: 8, 28>}, {pipeline_mode = #tpu.pipeline_mode<synchronous>, transform_indices = @transform_1, window_bounds = array<i64: 28, 896>}, {transform_indices = @transform_2, window_bounds = array<i64: 8, 896>}]} {
    %c0 = arith.constant 0 : index
    %c0_0 = arith.constant 0 : index
    %0 = vector.load %arg1[%c0, %c0_0] : memref<8x28xf32, #tpu.memory_space<vmem>>, vector<8x28xf32>
    %c0_1 = arith.constant 0 : index
    %c0_2 = arith.constant 0 : index
    %1 = vector.load %arg2[%c0_1, %c0_2] : memref<28x896xf32, #tpu.memory_space<vmem>>, vector<28x896xf32>
    %cst = arith.constant dense<0.000000e+00> : vector<8x896xf32>
    %2 = tpu.matmul %0, %1, %cst {dimension_numbers = #tpu.dot_dimension_numbers<[1], [0], [0], [1], [0, 0, 1, 1], [], []>} : vector<8x28xf32>, vector<28x896xf32>, vector<8x896xf32> -> vector<8x896xf32>
    %c0_3 = arith.constant 0 : index
    %c0_4 = arith.constant 0 : index
    %3 = vector.load %arg3[%c0_3, %c0_4] : memref<8x896xf32, #tpu.memory_space<vmem>>, vector<8x896xf32>
    tpu.vector_store %arg3[%c0_3, %c0_4], %2 {strides = array<i32>} : memref<8x896xf32, #tpu.memory_space<vmem>>, vector<8x896xf32>,
    return
  }
  func.func @transform_0(%arg0: i32) -> (i32, i32) {
    %c0_i32 = arith.constant 0 : i32
    %c0_i32_0 = arith.constant 0 : i32
    return %arg0, %c0_i32 : i32, i32
  }
  func.func @transform_1(%arg0: i32) -> (i32, i32) {
    %c0_i32 = arith.constant 0 : i32
    %c0_i32_0 = arith.constant 0 : i32
    %c0_i32_1 = arith.constant 0 : i32
    return %c0_i32, %c0_i32_0 : i32, i32
  }
  func.func @transform_2(%arg0: i32) -> (i32, i32) {
    %c0_i32 = arith.constant 0 : i32
    %c0_i32_0 = arith.constant 0 : i32
    return %arg0, %c0_i32 : i32, i32
  }
}

</mosaic_0001>

<llo_original>
// kernel: model_forward.1
$region0: #{model_forward.1}
  #allocation0 [shape = 'u32[]', space=smem, size = 0x4, offset = 0x4, fixed_abs, tag = 'smem constant byte address 0x4 - core index']
  #allocation1 [shape = 'u32[72,128]{1,0:T(1,128)}', space=vmem, size = 0x9000, scoped, tag = 'internal scratch']
  %s0 = inlined_call_operand.vmem [shape: f32[8,28], index: 0, kind: input, shape index: {}]
  %s1 = inlined_call_operand.vmem [shape: f32[28,896], index: 1, kind: input, shape index: {}]
  %s2 = inlined_call_operand.vmem [shape: f32[8,896], index: 2, kind: output, shape index: {}]
  %s3 = sld [smem:[#allocation0]]
  $region18: #{model_forward.1} parent=0
    _
  %s5 = ssub.s32 1, %s3
  %s6 = scalar_select 0, %s5, %s3
  // Predicated region
  $region2: #{model_forward.1} parent=0 // pred_check
    _
  $region3: #{model_forward.1} parent=0 // pred_check_branch
    %8 = sbr.rel (0) target = $region5
  $region4: #{model_forward.1} parent=0 // pred_region
    _
  $region5: #{model_forward.1} parent=0 // pred_fallthru
    _
  // Predicated region
  $region6: #{model_forward.1} parent=0 // pred_check
    _
  $region7: #{model_forward.1} parent=0 // pred_check_branch
    %10 = sbr.rel (0) target = $region9
  $region8: #{model_forward.1} parent=0 // pred_region
    _
  $region9: #{model_forward.1} parent=0 // pred_fallthru
    _
  %v11 = vld [vmem:[%s0] sm:$0xff]
  %v12 = vld [vmem:[%s1] sm:$0xff]
  %v13 = vld [vmem:[%s1 + $0x8] sm:$0xff]
  %v14 = vld [vmem:[%s1 + $0x10] sm:$0xff]
  %v15 = vld [vmem:[%s1 + $0x18] sm:$0xff]
  %v16 = vld [vmem:[%s1 + $0x20] sm:$0xff]
  %v17 = vld [vmem:[%s1 + $0x28] sm:$0xff]
  %v18 = vld [vmem:[%s1 + $0x30] sm:$0xff]
  %v19 = vld [vmem:[%s1 + $0x38] sm:$0xff]
  %v20 = vld [vmem:[%s1 + $0x40] sm:$0xff]
  %v21 = vld [vmem:[%s1 + $0x48] sm:$0xff]
  %v22 = vld [vmem:[%s1 + $0x50] sm:$0xff]
  %v23 = vld [vmem:[%s1 + $0x58] sm:$0xff]
  %v24 = vld [vmem:[%s1 + $0x60] sm:$0xff]
  %v25 = vld [vmem:[%s1 + $0x68] sm:$0xff]
  %v26 = vld [vmem:[%s1 + $0x70] sm:$0xff]
  %v27 = vld [vmem:[%s1 + $0x78] sm:$0xff]
  %v28 = vld [vmem:[%s1 + $0x80] sm:$0xff]
  %v29 = vld [vmem:[%s1 + $0x88] sm:$0xff]
  %v30 = vld [vmem:[%s1 + $0x90] sm:$0xff]
  %v31 = vld [vmem:[%s1 + $0x98] sm:$0xff]
  %v32 = vld [vmem:[%s1 + $0xa0] sm:$0xff]
  %v33 = vld [vmem:[%s1 + $0xa8] sm:$0xf]
  %v34 = vld [vmem:[%s1 + $0xb0] sm:$0xf]
  %v35 = vld [vmem:[%s1 + $0xb8] sm:$0xf]
  %v36 = vld [vmem:[%s1 + $0xc0] sm:$0xf]
  %v37 = vld [vmem:[%s1 + $0xc8] sm:$0xf]
  %v38 = vld [vmem:[%s1 + $0xd0] sm:$0xf]
  %v39 = vld [vmem:[%s1 + $0xd8] sm:$0xf]
  %vm40 = vcmask 228352
  %v42 = vsel %vm40, %v11, 0
  %vm44 = vcmask 1043456
  %v46 = vsel %vm44, %v33, 0
  %v49 = vsel %vm44, %v34, 0
  %v52 = vsel %vm44, %v35, 0
  %v55 = vsel %vm44, %v36, 0
  %v58 = vsel %vm44, %v37, 0
  %v61 = vsel %vm44, %v38, 0
  %v64 = vsel %vm44, %v39, 0
  %66 = vmatpush.msra.mxu0 0.0
  %67 = vmatpush.msra.mxu0 0.0
  %68 = vmatpush.msra.mxu0 0.0
  %69 = vmatpush.msra.mxu0 0.0
  %70 = vmatpush.msra.mxu0 0.0
  %71 = vmatpush.msra.mxu0 0.0
  %72 = vmatpush.msra.mxu0 0.0
  %73 = vmatpush.msra.mxu0 0.0
  %74 = vmatpush.msra.mxu0 0.0
  %75 = vmatpush.msra.mxu0 0.0
  %76 = vmatpush.msra.mxu0 0.0
  %77 = vmatpush.msra.mxu0 0.0
  %78 = vmatpush.msra.mxu0 %v46
  %79 = vmatpush.msra.mxu0 %v26
  %80 = vmatpush.msra.mxu0 %v19
  %81 = vmatpush.msra.mxu0 %v12
  %82 = vmatmul.f32.gmra.mxu0 %v42
  %v83 = vpop.f32.mrf.mxu0
  %v84 = vadd.f32 0.0, %v83
  %85 = vdwg.mxu0
  %86 = vmatpush.msra.mxu0 0.0
  %87 = vmatpush.msra.mxu0 0.0
  %88 = vmatpush.msra.mxu0 0.0
  %89 = vmatpush.msra.mxu0 0.0
  %90 = vmatpush.msra.mxu0 0.0
  %91 = vmatpush.msra.mxu0 0.0
  %92 = vmatpush.msra.mxu0 0.0
  %93 = vmatpush.msra.mxu0 0.0
  %94 = vmatpush.msra.mxu0 0.0
  %95 = vmatpush.msra.mxu0 0.0
  %96 = vmatpush.msra.mxu0 0.0
  %97 = vmatpush.msra.mxu0 0.0
  %98 = vmatpush.msra.mxu0 %v49
  %99 = vmatpush.msra.mxu0 %v27
  %100 = vmatpush.msra.mxu0 %v20
  %101 = vmatpush.msra.mxu0 %v13
  %102 = vmatmul.f32.gmra.mxu0 %v42
  %v103 = vpop.f32.mrf.mxu0
  %v104 = vadd.f32 0.0, %v103
  %105 = vdwg.mxu0
  %106 = vmatpush.msra.mxu0 0.0
  %107 = vmatpush.msra.mxu0 0.0
  %108 = vmatpush.msra.mxu0 0.0
  %109 = vmatpush.msra.mxu0 0.0
  %110 = vmatpush.msra.mxu0 0.0
  %111 = vmatpush.msra.mxu0 0.0
  %112 = vmatpush.msra.mxu0 0.0
  %113 = vmatpush.msra.mxu0 0.0
  %114 = vmatpush.msra.mxu0 0.0
  %115 = vmatpush.msra.mxu0 0.0
  %116 = vmatpush.msra.mxu0 0.0
  %117 = vmatpush.msra.mxu0 0.0
  %118 = vmatpush.msra.mxu0 %v52
  %119 = vmatpush.msra.mxu0 %v28
  %120 = vmatpush.msra.mxu0 %v21
  %121 = vmatpush.msra.mxu0 %v14
  %122 = vmatmul.f32.gmra.mxu0 %v42
  %v123 = vpop.f32.mrf.mxu0
  %v124 = vadd.f32 0.0, %v123
  %125 = vdwg.mxu0
  %126 = vmatpush.msra.mxu0 0.0
  %127 = vmatpush.msra.mxu0 0.0
  %128 = vmatpush.msra.mxu0 0.0
  %129 = vmatpush.msra.mxu0 0.0
  %130 = vmatpush.msra.mxu0 0.0
  %131 = vmatpush.msra.mxu0 0.0
  %132 = vmatpush.msra.mxu0 0.0
  %133 = vmatpush.msra.mxu0 0.0
  %134 = vmatpush.msra.mxu0 0.0
  %135 = vmatpush.msra.mxu0 0.0
  %136 = vmatpush.msra.mxu0 0.0
  %137 = vmatpush.msra.mxu0 0.0
  %138 = vmatpush.msra.mxu0 %v55
  %139 = vmatpush.msra.mxu0 %v29
  %140 = vmatpush.msra.mxu0 %v22
  %141 = vmatpush.msra.mxu0 %v15
  %142 = vmatmul.f32.gmra.mxu0 %v42
  %v143 = vpop.f32.mrf.mxu0
  %v144 = vadd.f32 0.0, %v143
  %145 = vdwg.mxu0
  %146 = vmatpush.msra.mxu0 0.0
  %147 = vmatpush.msra.mxu0 0.0
  %148 = vmatpush.msra.mxu0 0.0
  %149 = vmatpush.msra.mxu0 0.0
  %150 = vmatpush.msra.mxu0 0.0
  %151 = vmatpush.msra.mxu0 0.0
  %152 = vmatpush.msra.mxu0 0.0
  %153 = vmatpush.msra.mxu0 0.0
  %154 = vmatpush.msra.mxu0 0.0
  %155 = vmatpush.msra.mxu0 0.0
  %156 = vmatpush.msra.mxu0 0.0
  %157 = vmatpush.msra.mxu0 0.0
  %158 = vmatpush.msra.mxu0 %v58
  %159 = vmatpush.msra.mxu0 %v30
  %160 = vmatpush.msra.mxu0 %v23
  %161 = vmatpush.msra.mxu0 %v16
  %162 = vmatmul.f32.gmra.mxu0 %v42
  %v163 = vpop.f32.mrf.mxu0
  %v164 = vadd.f32 0.0, %v163
  %165 = vdwg.mxu0
  %166 = vmatpush.msra.mxu0 0.0
  %167 = vmatpush.msra.mxu0 0.0
  %168 = vmatpush.msra.mxu0 0.0
  %169 = vmatpush.msra.mxu0 0.0
  %170 = vmatpush.msra.mxu0 0.0
  %171 = vmatpush.msra.mxu0 0.0
  %172 = vmatpush.msra.mxu0 0.0
  %173 = vmatpush.msra.mxu0 0.0
  %174 = vmatpush.msra.mxu0 0.0
  %175 = vmatpush.msra.mxu0 0.0
  %176 = vmatpush.msra.mxu0 0.0
  %177 = vmatpush.msra.mxu0 0.0
  %178 = vmatpush.msra.mxu0 %v61
  %179 = vmatpush.msra.mxu0 %v31
  %180 = vmatpush.msra.mxu0 %v24
  %181 = vmatpush.msra.mxu0 %v17
  %182 = vmatmul.f32.gmra.mxu0 %v42
  %v183 = vpop.f32.mrf.mxu0
  %v184 = vadd.f32 0.0, %v183
  %185 = vdwg.mxu0
  %186 = vmatpush.msra.mxu0 0.0
  %187 = vmatpush.msra.mxu0 0.0
  %188 = vmatpush.msra.mxu0 0.0
  %189 = vmatpush.msra.mxu0 0.0
  %190 = vmatpush.msra.mxu0 0.0
  %191 = vmatpush.msra.mxu0 0.0
  %192 = vmatpush.msra.mxu0 0.0
  %193 = vmatpush.msra.mxu0 0.0
  %194 = vmatpush.msra.mxu0 0.0
  %195 = vmatpush.msra.mxu0 0.0
  %196 = vmatpush.msra.mxu0 0.0
  %197 = vmatpush.msra.mxu0 0.0
  %198 = vmatpush.msra.mxu0 %v64
  %199 = vmatpush.msra.mxu0 %v32
  %200 = vmatpush.msra.mxu0 %v25
  %201 = vmatpush.msra.mxu0 %v18
  %202 = vmatmul.f32.gmra.mxu0 %v42
  %v203 = vpop.f32.mrf.mxu0
  %v204 = vadd.f32 0.0, %v203
  %205 = vdwg.mxu0
  %206 = vst [vmem:[%s2] sm:$0xff] %v84
  %207 = vst [vmem:[%s2 + $0x8] sm:$0xff] %v104
  %208 = vst [vmem:[%s2 + $0x10] sm:$0xff] %v124
  %209 = vst [vmem:[%s2 + $0x18] sm:$0xff] %v144
  %210 = vst [vmem:[%s2 + $0x20] sm:$0xff] %v164
  %211 = vst [vmem:[%s2 + $0x28] sm:$0xff] %v184
  %212 = vst [vmem:[%s2 + $0x30] sm:$0xff] %v204
  // Predicated region
  $region10: #{model_forward.1} parent=0 // pred_check
    _
  $region11: #{model_forward.1} parent=0 // pred_check_branch
    %214 = sbr.rel (0) target = $region13
  $region12: #{model_forward.1} parent=0 // pred_region
    _
  $region13: #{model_forward.1} parent=0 // pred_fallthru
    _
  // Predicated region
  $region14: #{model_forward.1} parent=0 // pred_check
    _
  $region15: #{model_forward.1} parent=0 // pred_check_branch
    %216 = sbr.rel (0) target = $region17
  $region16: #{model_forward.1} parent=0 // pred_region
    _
  $region17: #{model_forward.1} parent=0 // pred_fallthru
    _

</llo_original>
